<compile_context>
chip_gen: v5e
topology: v5e:2x2
jax: 0.10.0
libtpu: 0.0.40
codegen_flags: <defaults>
</compile_context>

<pallas_src>
import functools

import jax
import jax.numpy as jnp
from jax.experimental import pallas as pl
from jax.experimental.pallas import tpu as pltpu


def _round_up(x: int, m: int) -> int:
    return (x + m - 1) // m * m


def _critic_kernel(s_ref, a_ref,
                   w1_ref, b1_ref,
                   w2_ref, b2_ref,
                   w3t_ref, b3_ref,
                   out_ref):
    # Layer 1: Linear(sd+ad, 128) + ReLU.
    # Single merged matmul: concat([state, action], -1) in-kernel (bf16),
    # one K=(sd+ad) dot against the resident bf16 w1, f32 accumulate.
    x = jnp.concatenate(
        [s_ref[...].astype(jnp.bfloat16), a_ref[...].astype(jnp.bfloat16)],
        axis=-1)
    h1 = jnp.dot(x, w1_ref[...], preferred_element_type=jnp.float32) + b1_ref[...]
    h1 = jnp.maximum(h1, 0.0).astype(jnp.bfloat16)

    # Layer 2: Linear(128, 64) + ReLU (bf16 operands, f32 accumulate).
    h2 = jnp.dot(h1, w2_ref[...], preferred_element_type=jnp.float32) + b2_ref[...]
    h2 = jnp.maximum(h2, 0.0)

    # Layer 3: Linear(64, 1) as f32 VPU multiply + lane reduction (avoids an
    # N=1 MXU matmul; w3 comes in pre-transposed as a (1, 64) row).
    q = jnp.sum(h2 * w3t_ref[...], axis=-1, keepdims=True) + b3_ref[...]
    out_ref[...] = q.astype(out_ref.dtype)


def critic_forward(state, action, params, *, block_b: int = 1024):
    """Critic forward pass.

    params: dict with
      w1 (sd+ad, 128), b1 (1, 128), w2 (128, 64), b2 (1, 64), w3 (64, 1), b3 (1, 1)
    block_b: batch tile size (rows per grid step). Rounded to a multiple of 8,
      capped by the batch, and shrunk when needed so the grid has >=2 steps
      (v7x megacore / pipelining). Working set at tb=1024 is well under 1 MiB.
    """
    B, sd = state.shape
    ad = action.shape[1]
    feat1 = params["w1"].shape[0]
    assert feat1 == sd + ad, (feat1, sd, ad)

    # Batch tile: multiple of 8, no larger than the 8-rounded batch.
    b8 = _round_up(B, 8)
    tb = max(8, min(_round_up(block_b, 8), b8))
    # Prefer >= 2 grid steps when the batch allows it (2 TensorCores on v7x,
    # and software pipelining needs >1 step).
    if b8 > 8 and pl.cdiv(B, tb) < 2:
        tb = max(8, _round_up((b8 + 1) // 2, 8))
    grid = (pl.cdiv(B, tb),)   # partial last block handled by Pallas; no jnp.pad

    # bf16 weights for the MXU (cast once per call; activations cast in-kernel).
    w1 = params["w1"].astype(jnp.bfloat16)
    w2 = params["w2"].astype(jnp.bfloat16)
    # w3 as a lane-dense f32 row (1, 64) for the VPU+reduce final layer.
    w3t = jnp.reshape(params["w3"], (1, -1)).astype(jnp.float32)

    batch_spec = lambda cols: pl.BlockSpec((tb, cols), lambda i: (i, 0))
    const_spec = lambda shape: pl.BlockSpec(shape, lambda i: (0, 0))

    out = pl.pallas_call(
        _critic_kernel,
        out_shape=jax.ShapeDtypeStruct((B, 1), jnp.float32),
        grid=grid,
        in_specs=[
            batch_spec(sd),                   # state   (tiled over batch)
            batch_spec(ad),                   # action  (tiled over batch)
            const_spec((sd + ad, 128)),       # w1 (bf16, resident)
            const_spec((1, 128)),             # b1 (f32)
            const_spec((128, 64)),            # w2 (bf16, resident)
            const_spec((1, 64)),              # b2 (f32)
            const_spec((1, 64)),              # w3 (f32, transposed row)
            const_spec((1, 1)),               # b3 (f32)
        ],
        out_specs=pl.BlockSpec((tb, 1), lambda i: (i, 0)),
        compiler_params=pltpu.CompilerParams(
            dimension_semantics=("parallel",),
        ),
    )(state, action,
      w1, params["b1"],
      w2, params["b2"],
      w3t, params["b3"])

    return out


def init_params(key, state_dim, action_dim):
    """Deterministic synthetic init (uniform, like torch's default Linear init range)."""
    def linear(k, fan_in, fan_out):
        kw, kb = jax.random.split(k)
        bound = 1.0 / jnp.sqrt(fan_in)
        w = jax.random.uniform(kw, (fan_in, fan_out), jnp.float32, -bound, bound)
        b = jax.random.uniform(kb, (1, fan_out), jnp.float32, -bound, bound)
        return w, b

    k1, k2, k3 = jax.random.split(key, 3)
    w1, b1 = linear(k1, state_dim + action_dim, 128)
    w2, b2 = linear(k2, 128, 64)
    w3, b3 = linear(k3, 64, 1)
    return {"w1": w1, "b1": b1, "w2": w2, "b2": b2, "w3": w3, "b3": b3}


def critic_ref_f32(state, action, params):
    """Pure-JAX f32 reference (matches the torch module exactly)."""
    x = jnp.concatenate([state, action], axis=1)
    h1 = jnp.maximum(x @ params["w1"] + params["b1"], 0.0)
    h2 = jnp.maximum(h1 @ params["w2"] + params["b2"], 0.0)
    return h2 @ params["w3"] + params["b3"]


def critic_ref_bf16(state, action, params):
    """Reference with the same bf16-operand / f32-accumulate matmul precision."""
    x = jnp.concatenate([state, action], axis=1).astype(jnp.bfloat16)
    h1 = jnp.dot(x, params["w1"].astype(jnp.bfloat16),
                 preferred_element_type=jnp.float32) + params["b1"]
    h1 = jnp.maximum(h1, 0.0).astype(jnp.bfloat16)
    h2 = jnp.dot(h1, params["w2"].astype(jnp.bfloat16),
                 preferred_element_type=jnp.float32) + params["b2"]
    h2 = jnp.maximum(h2, 0.0)
    return h2 @ params["w3"].astype(jnp.float32) + params["b3"]


if __name__ == "__main__":
    key = jax.random.PRNGKey(0)
    k_p, k_s, k_a = jax.random.split(key, 3)

    # Small shapes; B=20 with block_b=8 gives 3 grid steps including a partial
    # last block (rows 16..19 of a 24-row tile footprint).
    B, state_dim, action_dim = 20, 16, 8
    params = init_params(k_p, state_dim, action_dim)
    state = jax.random.normal(k_s, (B, state_dim), jnp.float32)
    action = jax.random.normal(k_a, (B, action_dim), jnp.float32)

    fwd = jax.jit(functools.partial(critic_forward, block_b=8))
    out = jax.block_until_ready(fwd(state, action, params))

    assert out.shape == (B, 1), out.shape
    # Loose check vs. the exact f32 reference (kernel matmuls are bf16-operand).
    ref32 = critic_ref_f32(state, action, params)
    assert jnp.allclose(out, ref32, atol=5e-2, rtol=5e-2), (out, ref32)
    # Tighter check vs. a same-precision (bf16 operand, f32 accumulate) reference.
    ref16 = critic_ref_bf16(state, action, params)
    assert jnp.allclose(out, ref16, atol=2e-3, rtol=2e-3), (out, ref16)
    print("KERNEL_OK")
</pallas_src>

<mosaic_0001>
module attributes {stable_mosaic.version = 11 : i64} {
  func.func @_critic_kernel(%arg0: i32, %arg1: memref<8x16xf32, #tpu.memory_space<vmem>>, %arg2: memref<8x8xf32, #tpu.memory_space<vmem>>, %arg3: memref<24x128xbf16, #tpu.memory_space<vmem>>, %arg4: memref<1x128xf32, #tpu.memory_space<vmem>>, %arg5: memref<128x64xbf16, #tpu.memory_space<vmem>>, %arg6: memref<1x64xf32, #tpu.memory_space<vmem>>, %arg7: memref<1x64xf32, #tpu.memory_space<vmem>>, %arg8: memref<1x1xf32, #tpu.memory_space<vmem>>, %arg9: memref<8x1xf32, #tpu.memory_space<vmem>>) attributes {dimension_semantics = [#tpu.dimension_semantics<parallel>], iteration_bounds = array<i64: 3>, scalar_prefetch = 0 : i64, scratch_operands = 0 : i64, tpu.core_type = #tpu.core_type<tc>, window_params = [{transform_indices = @transform_0, window_bounds = array<i64: 8, 16>}, {transform_indices = @transform_1, window_bounds = array<i64: 8, 8>}, {pipeline_mode = #tpu.pipeline_mode<synchronous>, transform_indices = @transform_2, window_bounds = array<i64: 24, 128>}, {pipeline_mode = #tpu.pipeline_mode<synchronous>, transform_indices = @transform_3, window_bounds = array<i64: 1, 128>}, {pipeline_mode = #tpu.pipeline_mode<synchronous>, transform_indices = @transform_4, window_bounds = array<i64: 128, 64>}, {pipeline_mode = #tpu.pipeline_mode<synchronous>, transform_indices = @transform_5, window_bounds = array<i64: 1, 64>}, {pipeline_mode = #tpu.pipeline_mode<synchronous>, transform_indices = @transform_6, window_bounds = array<i64: 1, 64>}, {pipeline_mode = #tpu.pipeline_mode<synchronous>, transform_indices = @transform_7, window_bounds = array<i64: 1, 1>}, {transform_indices = @transform_8, window_bounds = array<i64: 8, 1>}]} {
    %c0 = arith.constant 0 : index
    %c0_0 = arith.constant 0 : index
    %0 = vector.load %arg1[%c0, %c0_0] : memref<8x16xf32, #tpu.memory_space<vmem>>, vector<8x16xf32>
    %1 = arith.truncf %0 : vector<8x16xf32> to vector<8x16xbf16>
    %c0_1 = arith.constant 0 : index
    %c0_2 = arith.constant 0 : index
    %2 = vector.load %arg2[%c0_1, %c0_2] : memref<8x8xf32, #tpu.memory_space<vmem>>, vector<8x8xf32>
    %3 = arith.truncf %2 : vector<8x8xf32> to vector<8x8xbf16>
    %4 = tpu.concatenate %1, %3 in 1 : vector<8x16xbf16>, vector<8x8xbf16> -> vector<8x24xbf16>
    %c0_3 = arith.constant 0 : index
    %c0_4 = arith.constant 0 : index
    %5 = vector.load %arg3[%c0_3, %c0_4] : memref<24x128xbf16, #tpu.memory_space<vmem>>, vector<24x128xbf16>
    %cst = arith.constant dense<0.000000e+00> : vector<8x128xf32>
    %6 = tpu.matmul %4, %5, %cst {dimension_numbers = #tpu.dot_dimension_numbers<[1], [0], [0], [1], [0, 0, 1, 1], [], []>} : vector<8x24xbf16>, vector<24x128xbf16>, vector<8x128xf32> -> vector<8x128xf32>
    %c0_5 = arith.constant 0 : index
    %c0_6 = arith.constant 0 : index
    %7 = vector.load %arg4[%c0_5, %c0_6] : memref<1x128xf32, #tpu.memory_space<vmem>>, vector<1x128xf32>
    %8 = vector.broadcast %7 : vector<1x128xf32> to vector<8x128xf32>
    %9 = arith.addf %6, %8 : vector<8x128xf32>
    %cst_7 = arith.constant 0.000000e+00 : f32
    %10 = vector.broadcast %cst_7 : f32 to vector<8x128xf32>
    %11 = arith.maximumf %9, %10 : vector<8x128xf32>
    %12 = arith.truncf %11 : vector<8x128xf32> to vector<8x128xbf16>
    %c0_8 = arith.constant 0 : index
    %c0_9 = arith.constant 0 : index
    %13 = vector.load %arg5[%c0_8, %c0_9] : memref<128x64xbf16, #tpu.memory_space<vmem>>, vector<128x64xbf16>
    %cst_10 = arith.constant dense<0.000000e+00> : vector<8x64xf32>
    %14 = tpu.matmul %12, %13, %cst_10 {dimension_numbers = #tpu.dot_dimension_numbers<[1], [0], [0], [1], [0, 0, 1, 1], [], []>} : vector<8x128xbf16>, vector<128x64xbf16>, vector<8x64xf32> -> vector<8x64xf32>
    %c0_11 = arith.constant 0 : index
    %c0_12 = arith.constant 0 : index
    %15 = vector.load %arg6[%c0_11, %c0_12] : memref<1x64xf32, #tpu.memory_space<vmem>>, vector<1x64xf32>
    %16 = vector.broadcast %15 : vector<1x64xf32> to vector<8x64xf32>
    %17 = arith.addf %14, %16 : vector<8x64xf32>
    %cst_13 = arith.constant 0.000000e+00 : f32
    %18 = vector.broadcast %cst_13 : f32 to vector<8x64xf32>
    %19 = arith.maximumf %17, %18 : vector<8x64xf32>
    %c0_14 = arith.constant 0 : index
    %c0_15 = arith.constant 0 : index
    %20 = vector.load %arg7[%c0_14, %c0_15] : memref<1x64xf32, #tpu.memory_space<vmem>>, vector<1x64xf32>
    %21 = vector.broadcast %20 : vector<1x64xf32> to vector<8x64xf32>
    %22 = arith.mulf %19, %21 : vector<8x64xf32>
    %cst_16 = arith.constant dense<0.000000e+00> : vector<8xf32>
    %23 = vector.multi_reduction <add>, %22, %cst_16 [1] : vector<8x64xf32> to vector<8xf32>
    %24 = vector.shape_cast %23 : vector<8xf32> to vector<8x1xf32>
    %c0_17 = arith.constant 0 : index
    %c0_18 = arith.constant 0 : index
    %25 = vector.load %arg8[%c0_17, %c0_18] : memref<1x1xf32, #tpu.memory_space<vmem>>, vector<1x1xf32>
    %26 = vector.broadcast %25 : vector<1x1xf32> to vector<8x1xf32>
    %27 = arith.addf %24, %26 : vector<8x1xf32>
    %c0_19 = arith.constant 0 : index
    %c0_20 = arith.constant 0 : index
    %28 = vector.load %arg9[%c0_19, %c0_20] : memref<8x1xf32, #tpu.memory_space<vmem>>, vector<8x1xf32>
    tpu.vector_store %arg9[%c0_19, %c0_20], %27 {strides = array<i32>} : memref<8x1xf32, #tpu.memory_space<vmem>>, vector<8x1xf32>,
    return
  }
  func.func @transform_0(%arg0: i32) -> (i32, i32) {
    %c0_i32 = arith.constant 0 : i32
    %c0_i32_0 = arith.constant 0 : i32
    return %arg0, %c0_i32 : i32, i32
  }
  func.func @transform_1(%arg0: i32) -> (i32, i32) {
    %c0_i32 = arith.constant 0 : i32
    %c0_i32_0 = arith.constant 0 : i32
    return %arg0, %c0_i32 : i32, i32
  }
  func.func @transform_2(%arg0: i32) -> (i32, i32) {
    %c0_i32 = arith.constant 0 : i32
    %c0_i32_0 = arith.constant 0 : i32
    %c0_i32_1 = arith.constant 0 : i32
    return %c0_i32, %c0_i32_0 : i32, i32
  }
  func.func @transform_3(%arg0: i32) -> (i32, i32) {
    %c0_i32 = arith.constant 0 : i32
    %c0_i32_0 = arith.constant 0 : i32
    %c0_i32_1 = arith.constant 0 : i32
    return %c0_i32, %c0_i32_0 : i32, i32
  }
  func.func @transform_4(%arg0: i32) -> (i32, i32) {
    %c0_i32 = arith.constant 0 : i32
    %c0_i32_0 = arith.constant 0 : i32
    %c0_i32_1 = arith.constant 0 : i32
    return %c0_i32, %c0_i32_0 : i32, i32
  }
  func.func @transform_5(%arg0: i32) -> (i32, i32) {
    %c0_i32 = arith.constant 0 : i32
    %c0_i32_0 = arith.constant 0 : i32
    %c0_i32_1 = arith.constant 0 : i32
    return %c0_i32, %c0_i32_0 : i32, i32
  }
  func.func @transform_6(%arg0: i32) -> (i32, i32) {
    %c0_i32 = arith.constant 0 : i32
    %c0_i32_0 = arith.constant 0 : i32
    %c0_i32_1 = arith.constant 0 : i32
    return %c0_i32, %c0_i32_0 : i32, i32
  }
  func.func @transform_7(%arg0: i32) -> (i32, i32) {
    %c0_i32 = arith.constant 0 : i32
    %c0_i32_0 = arith.constant 0 : i32
    %c0_i32_1 = arith.constant 0 : i32
    return %c0_i32, %c0_i32_0 : i32, i32
  }
  func.func @transform_8(%arg0: i32) -> (i32, i32) {
    %c0_i32 = arith.constant 0 : i32
    %c0_i32_0 = arith.constant 0 : i32
    return %arg0, %c0_i32 : i32, i32
  }
}

</mosaic_0001>

<llo_original>
// kernel: critic_forward.1
$region0: #{critic_forward.1}
  #allocation0 [shape = 'u32[]', space=smem, size = 0x4, offset = 0x4, fixed_abs, tag = 'smem constant byte address 0x4 - core index']
  #allocation1 [shape = 'u32[72,128]{1,0:T(1,128)}', space=vmem, size = 0x9000, scoped, tag = 'internal scratch']
  #allocation2 [shape = 'f32[1,1]{1,0:T(1,128)S(1)}', space=vmem, size = 0x200, scoped, tag = 'scoped memory for critic_forward.1']
  %s0 = inlined_call_operand.vmem [shape: f32[20,16], index: 0, kind: input, shape index: {}]
  %s1 = inlined_call_operand.vmem [shape: f32[20,8], index: 1, kind: input, shape index: {}]
  %s2 = inlined_call_operand.vmem [shape: bf16[24,128], index: 2, kind: input, shape index: {}]
  %s3 = inlined_call_operand.vmem [shape: f32[1,128], index: 3, kind: input, shape index: {}]
  %s4 = inlined_call_operand.vmem [shape: bf16[128,64], index: 4, kind: input, shape index: {}]
  %s5 = inlined_call_operand.vmem [shape: f32[1,64], index: 5, kind: input, shape index: {}]
  %s6 = inlined_call_operand.vmem [shape: f32[1,64], index: 6, kind: input, shape index: {}]
  %s7 = inlined_call_operand.<no memory space> [shape: f32[1,1], index: 7, kind: input, shape index: {}]
  %s8 = inlined_call_operand.vmem [shape: f32[20,1], index: 8, kind: output, shape index: {}]
  %s9 = sld [smem:[#allocation0]]
  $region65: #{critic_forward.1} parent=0
    _
  %s11 = ssub.s32 1, %s9
  %s12 = scalar_select 0, %s11, %s9
  %v13 = vstv %s7
  %14 = vst [vmem:[#allocation2] sm:$0x1] %v13
  loop: start=0, step=1, limit=5
  $region2: #{critic_forward.1} parent=0 // loop_pre_header
    _
  $region3: #{critic_forward.1} parent=0 // loop_header
    %s16 = sphi 0, %s20
    %p17 = scmp.ge.s32.totalorder %s16, 5
    %s26 = sphi 0, %s28
    %s29 = sphi 0, %s26
    %s30 = sphi 0, %s29
    %s46 = sphi 0, %s30
    %s52 = sphi 0, %s54
    %s55 = sphi 0, %s52
    %s56 = sphi 0, %s55
    %s72 = sphi 0, %s56
    %s76 = sphi 0, %s76
    %s78 = sphi 0, %s76
    %s79 = sphi 0, %s78
    %s93 = sphi 0, %s79
    %s97 = sphi 0, %s97
    %s99 = sphi 0, %s97
    %s100 = sphi 0, %s99
    %s114 = sphi 0, %s100
    %s118 = sphi 0, %s118
    %s120 = sphi 0, %s118
    %s121 = sphi 0, %s120
    %s135 = sphi 0, %s121
    %s139 = sphi 0, %s139
    %s141 = sphi 0, %s139
    %s142 = sphi 0, %s141
    %s156 = sphi 0, %s142
    %s160 = sphi 0, %s160
    %s162 = sphi 0, %s160
    %s163 = sphi 0, %s162
    %s177 = sphi 0, %s163
    %s181 = sphi 0, %s181
    %s183 = sphi 0, %s181
    %s184 = sphi 0, %s183
    %s198 = sphi 0, %s184
    %s204 = sphi 0, %s206
    %s207 = sphi 0, %s204
    %s208 = sphi 0, %s207
    %s224 = sphi 0, %s208
  $region4: #{critic_forward.1} parent=0 // loop_header_branch
    %19 = sbr.rel (%p17) target = $region8
  $region5: #{critic_forward.1} parent=0 // loop_body
    %s21 = ssub.s32 %s16, 1
    %s22 = ssub.s32 %s16, 2
    %s23 = sadd.s32 %s16, 1
    %s24 = ssub.s32 %s16, %s23
    %p25 = scmp.eq.s32.totalorder %s24, 0
    %s27 = sadd.s32 %s26, 1
    %s28 = scalar_select %p25, %s26, %s27
    %p31 = pneg %p25
    %p32 = scmp.eq.s32.totalorder %s16, 2
    %p33 = por %p31, %p32
    %p34 = scmp.ne.s32.totalorder %s26, %s29
    %p35 = scmp.eq.s32.totalorder %s16, 0
    %p36 = por %p34, %p35
    %p37 = scmp.ne.s32.totalorder %s26, %s29
    %p38 = scmp.eq.s32.totalorder %s21, 2
    %p39 = por %p37, %p38
    %p40 = scmp.ne.s32.totalorder %s29, %s30
    %p41 = scmp.eq.s32.totalorder %s21, 0
    %p42 = por %p40, %p41
    %p43 = scmp.ne.s32.totalorder %s29, %s30
    %p44 = scmp.eq.s32.totalorder %s22, 2
    %p45 = por %p43, %p44
    %p47 = scmp.ne.s32.totalorder %s30, %s46
    %p48 = scmp.eq.s32.totalorder %s22, 0
    %p49 = por %p47, %p48
    %s50 = ssub.s32 %s16, %s23
    %p51 = scmp.eq.s32.totalorder %s50, 0
    %s53 = sadd.s32 %s52, 1
    %s54 = scalar_select %p51, %s52, %s53
    %p57 = pneg %p51
    %p58 = scmp.eq.s32.totalorder %s16, 2
    %p59 = por %p57, %p58
    %p60 = scmp.ne.s32.totalorder %s52, %s55
    %p61 = scmp.eq.s32.totalorder %s16, 0
    %p62 = por %p60, %p61
    %p63 = scmp.ne.s32.totalorder %s52, %s55
    %p64 = scmp.eq.s32.totalorder %s21, 2
    %p65 = por %p63, %p64
    %p66 = scmp.ne.s32.totalorder %s55, %s56
    %p67 = scmp.eq.s32.totalorder %s21, 0
    %p68 = por %p66, %p67
    %p69 = scmp.ne.s32.totalorder %s55, %s56
    %p70 = scmp.eq.s32.totalorder %s22, 2
    %p71 = por %p69, %p70
    %p73 = scmp.ne.s32.totalorder %s56, %s72
    %p74 = scmp.eq.s32.totalorder %s22, 0
    %p75 = por %p73, %p74
    %s77 = sadd.s32 %s76, 1
    %p80 = scmp.eq.s32.totalorder %s16, 2
    %p81 = scmp.ne.s32.totalorder %s76, %s78
    %p82 = scmp.eq.s32.totalorder %s16, 0
    %p83 = por %p81, %p82
    %p84 = scmp.ne.s32.totalorder %s76, %s78
    %p85 = scmp.eq.s32.totalorder %s21, 2
    %p86 = por %p84, %p85
    %p87 = scmp.ne.s32.totalorder %s78, %s79
    %p88 = scmp.eq.s32.totalorder %s21, 0
    %p89 = por %p87, %p88
    %p90 = scmp.ne.s32.totalorder %s78, %s79
    %p91 = scmp.eq.s32.totalorder %s22, 2
    %p92 = por %p90, %p91
    %p94 = scmp.ne.s32.totalorder %s79, %s93
    %p95 = scmp.eq.s32.totalorder %s22, 0
    %p96 = por %p94, %p95
    %s98 = sadd.s32 %s97, 1
    %p101 = scmp.eq.s32.totalorder %s16, 2
    %p102 = scmp.ne.s32.totalorder %s97, %s99
    %p103 = scmp.eq.s32.totalorder %s16, 0
    %p104 = por %p102, %p103
    %p105 = scmp.ne.s32.totalorder %s97, %s99
    %p106 = scmp.eq.s32.totalorder %s21, 2
    %p107 = por %p105, %p106
    %p108 = scmp.ne.s32.totalorder %s99, %s100
    %p109 = scmp.eq.s32.totalorder %s21, 0
    %p110 = por %p108, %p109
    %p111 = scmp.ne.s32.totalorder %s99, %s100
    %p112 = scmp.eq.s32.totalorder %s22, 2
    %p113 = por %p111, %p112
    %p115 = scmp.ne.s32.totalorder %s100, %s114
    %p116 = scmp.eq.s32.totalorder %s22, 0
    %p117 = por %p115, %p116
    %s119 = sadd.s32 %s118, 1
    %p122 = scmp.eq.s32.totalorder %s16, 2
    %p123 = scmp.ne.s32.totalorder %s118, %s120
    %p124 = scmp.eq.s32.totalorder %s16, 0
    %p125 = por %p123, %p124
    %p126 = scmp.ne.s32.totalorder %s118, %s120
    %p127 = scmp.eq.s32.totalorder %s21, 2
    %p128 = por %p126, %p127
    %p129 = scmp.ne.s32.totalorder %s120, %s121
    %p130 = scmp.eq.s32.totalorder %s21, 0
    %p131 = por %p129, %p130
    %p132 = scmp.ne.s32.totalorder %s120, %s121
    %p133 = scmp.eq.s32.totalorder %s22, 2
    %p134 = por %p132, %p133
    %p136 = scmp.ne.s32.totalorder %s121, %s135
    %p137 = scmp.eq.s32.totalorder %s22, 0
    %p138 = por %p136, %p137
    %s140 = sadd.s32 %s139, 1
    %p143 = scmp.eq.s32.totalorder %s16, 2
    %p144 = scmp.ne.s32.totalorder %s139, %s141
    %p145 = scmp.eq.s32.totalorder %s16, 0
    %p146 = por %p144, %p145
    %p147 = scmp.ne.s32.totalorder %s139, %s141
    %p148 = scmp.eq.s32.totalorder %s21, 2
    %p149 = por %p147, %p148
    %p150 = scmp.ne.s32.totalorder %s141, %s142
    %p151 = scmp.eq.s32.totalorder %s21, 0
    %p152 = por %p150, %p151
    %p153 = scmp.ne.s32.totalorder %s141, %s142
    %p154 = scmp.eq.s32.totalorder %s22, 2
    %p155 = por %p153, %p154
    %p157 = scmp.ne.s32.totalorder %s142, %s156
    %p158 = scmp.eq.s32.totalorder %s22, 0
    %p159 = por %p157, %p158
    %s161 = sadd.s32 %s160, 1
    %p164 = scmp.eq.s32.totalorder %s16, 2
    %p165 = scmp.ne.s32.totalorder %s160, %s162
    %p166 = scmp.eq.s32.totalorder %s16, 0
    %p167 = por %p165, %p166
    %p168 = scmp.ne.s32.totalorder %s160, %s162
    %p169 = scmp.eq.s32.totalorder %s21, 2
    %p170 = por %p168, %p169
    %p171 = scmp.ne.s32.totalorder %s162, %s163
    %p172 = scmp.eq.s32.totalorder %s21, 0
    %p173 = por %p171, %p172
    %p174 = scmp.ne.s32.totalorder %s162, %s163
    %p175 = scmp.eq.s32.totalorder %s22, 2
    %p176 = por %p174, %p175
    %p178 = scmp.ne.s32.totalorder %s163, %s177
    %p179 = scmp.eq.s32.totalorder %s22, 0
    %p180 = por %p178, %p179
    %s182 = sadd.s32 %s181, 1
    %p185 = scmp.eq.s32.totalorder %s16, 2
    %p186 = scmp.ne.s32.totalorder %s181, %s183
    %p187 = scmp.eq.s32.totalorder %s16, 0
    %p188 = por %p186, %p187
    %p189 = scmp.ne.s32.totalorder %s181, %s183
    %p190 = scmp.eq.s32.totalorder %s21, 2
    %p191 = por %p189, %p190
    %p192 = scmp.ne.s32.totalorder %s183, %s184
    %p193 = scmp.eq.s32.totalorder %s21, 0
    %p194 = por %p192, %p193
    %p195 = scmp.ne.s32.totalorder %s183, %s184
    %p196 = scmp.eq.s32.totalorder %s22, 2
    %p197 = por %p195, %p196
    %p199 = scmp.ne.s32.totalorder %s184, %s198
    %p200 = scmp.eq.s32.totalorder %s22, 0
    %p201 = por %p199, %p200
    %s202 = ssub.s32 %s16, %s23
    %p203 = scmp.eq.s32.totalorder %s202, 0
    %s205 = sadd.s32 %s204, 1
    %s206 = scalar_select %p203, %s204, %s205
    %p209 = pneg %p203
    %p210 = scmp.eq.s32.totalorder %s16, 2
    %p211 = por %p209, %p210
    %p212 = scmp.ne.s32.totalorder %s204, %s207
    %p213 = scmp.eq.s32.totalorder %s16, 0
    %p214 = por %p212, %p213
    %p215 = scmp.ne.s32.totalorder %s204, %s207
    %p216 = scmp.eq.s32.totalorder %s21, 2
    %p217 = por %p215, %p216
    %p218 = scmp.ne.s32.totalorder %s207, %s208
    %p219 = scmp.eq.s32.totalorder %s21, 0
    %p220 = por %p218, %p219
    %p221 = scmp.ne.s32.totalorder %s207, %s208
    %p222 = scmp.eq.s32.totalorder %s22, 2
    %p223 = por %p221, %p222
    %p225 = scmp.ne.s32.totalorder %s208, %s224
    %p226 = scmp.eq.s32.totalorder %s22, 0
    %p227 = por %p225, %p226
    %p228 = scmp.le.s32.totalorder 1, %s16
    %p229 = scmp.lt.s32.totalorder %s16, 4
    %p230 = pnand %p228, %p229
    %p231 = pneg %p230
    // Predicated region
    $region9: #{critic_forward.1} parent=5 // pred_check
      _
    $region10: #{critic_forward.1} parent=5 // pred_check_branch
      %233 = sbr.rel (%p230) target = $region12
    $region11: #{critic_forward.1} parent=5 // pred_region
      %s234 = ssub.s32 %s16, 1
      // Predicated region
      $region13: #{critic_forward.1} parent=11 // pred_check
        %p235 = pneg %p89
      $region14: #{critic_forward.1} parent=11 // pred_check_branch
        %237 = sbr.rel (%p235) target = $region16
      $region15: #{critic_forward.1} parent=11 // pred_region
        _
      $region16: #{critic_forward.1} parent=11 // pred_fallthru
        _
      // Predicated region
      $region17: #{critic_forward.1} parent=11 // pred_check
        %p238 = pneg %p110
      $region18: #{critic_forward.1} parent=11 // pred_check_branch
        %240 = sbr.rel (%p238) target = $region20
      $region19: #{critic_forward.1} parent=11 // pred_region
        _
      $region20: #{critic_forward.1} parent=11 // pred_fallthru
        _
      // Predicated region
      $region21: #{critic_forward.1} parent=11 // pred_check
        %p241 = pneg %p131
      $region22: #{critic_forward.1} parent=11 // pred_check_branch
        %243 = sbr.rel (%p241) target = $region24
      $region23: #{critic_forward.1} parent=11 // pred_region
        _
      $region24: #{critic_forward.1} parent=11 // pred_fallthru
        _
      // Predicated region
      $region25: #{critic_forward.1} parent=11 // pred_check
        %p244 = pneg %p152
      $region26: #{critic_forward.1} parent=11 // pred_check_branch
        %246 = sbr.rel (%p244) target = $region28
      $region27: #{critic_forward.1} parent=11 // pred_region
        _
      $region28: #{critic_forward.1} parent=11 // pred_fallthru
        _
      // Predicated region
      $region29: #{critic_forward.1} parent=11 // pred_check
        %p247 = pneg %p173
      $region30: #{critic_forward.1} parent=11 // pred_check_branch
        %249 = sbr.rel (%p247) target = $region32
      $region31: #{critic_forward.1} parent=11 // pred_region
        _
      $region32: #{critic_forward.1} parent=11 // pred_fallthru
        _
      // Predicated region
      $region33: #{critic_forward.1} parent=11 // pred_check
        %p250 = pneg %p194
      $region34: #{critic_forward.1} parent=11 // pred_check_branch
        %252 = sbr.rel (%p250) target = $region36
      $region35: #{critic_forward.1} parent=11 // pred_region
        _
      $region36: #{critic_forward.1} parent=11 // pred_fallthru
        _
    $region12: #{critic_forward.1} parent=5 // pred_fallthru
      _
    %p253 = scmp.lt.s32.totalorder %s16, 3
    // Predicated region
    $region37: #{critic_forward.1} parent=5 // pred_check
      %p254 = pneg %p253
    $region38: #{critic_forward.1} parent=5 // pred_check_branch
      %256 = sbr.rel (%p254) target = $region40
    $region39: #{critic_forward.1} parent=5 // pred_region
      // Predicated region
      $region41: #{critic_forward.1} parent=39 // pred_check
        %p257 = pneg %p36
      $region42: #{critic_forward.1} parent=39 // pred_check_branch
        %259 = sbr.rel (%p257) target = $region44
      $region43: #{critic_forward.1} parent=39 // pred_region
        %p260 = scmp.lt.s32.totalorder %s16, 2
        %s261 = scalar_select %p260, %s16, 2
        %s262 = smul.addr %s261, 8
        %s263 = scalar_lea.vmem %s0, %s262
      $region44: #{critic_forward.1} parent=39 // pred_fallthru
        _
      // Predicated region
      $region45: #{critic_forward.1} parent=39 // pred_check
        %p264 = pneg %p62
      $region46: #{critic_forward.1} parent=39 // pred_check_branch
        %266 = sbr.rel (%p264) target = $region48
      $region47: #{critic_forward.1} parent=39 // pred_region
        %p267 = scmp.lt.s32.totalorder %s16, 2
        %s268 = scalar_select %p267, %s16, 2
        %s269 = smul.addr %s268, 8
        %s270 = scalar_lea.vmem %s1, %s269
      $region48: #{critic_forward.1} parent=39 // pred_fallthru
        _
    $region40: #{critic_forward.1} parent=5 // pred_fallthru
      _
    %p271 = scmp.le.s32.totalorder 1, %s16
    %p272 = scmp.lt.s32.totalorder %s16, 4
    %p273 = pnand %p271, %p272
    %p274 = pneg %p273
    // Predicated region
    $region49: #{critic_forward.1} parent=5 // pred_check
      _
    $region50: #{critic_forward.1} parent=5 // pred_check_branch
      %276 = sbr.rel (%p273) target = $region52
    $region51: #{critic_forward.1} parent=5 // pred_region
      %s277 = ssub.s32 %s16, 1
      %p278 = scmp.lt.s32.totalorder %s21, 2
      %s279 = scalar_select %p278, %s21, 2
      %s280 = smul.addr %s279, 8
      %s281 = scalar_lea.vmem %s0, %s280
      %p282 = pneg %p42
      %p283 = pneg %p39
      %p284 = scmp.lt.s32.totalorder %s21, 2
      %s285 = scalar_select %p284, %s21, 2
      %s286 = smul.addr %s285, 8
      %s287 = scalar_lea.vmem %s1, %s286
      %p288 = pneg %p68
      %p289 = pneg %p65
      %p290 = pneg %p89
      %p291 = pneg %p86
      %p292 = pneg %p110
      %p293 = pneg %p107
      %p294 = pneg %p131
      %p295 = pneg %p128
      %p296 = pneg %p152
      %p297 = pneg %p149
      %p298 = pneg %p173
      %p299 = pneg %p170
      %p300 = pneg %p194
      %p301 = pneg %p191
      %p302 = pneg %p220
      %p303 = pneg %p217
      %p304 = scmp.lt.s32.totalorder %s21, 2
      %s305 = scalar_select %p304, %s21, 2
      %s306 = smul.addr %s305, 8
      %s307 = scalar_lea.vmem %s8, %s306
      %p308 = scmp.lt.s32.totalorder %s21, 2
      %s309 = scalar_select %p308, %s21, 2
      %s310 = smul.addr %s309, 8
      %s311 = scalar_lea.vmem %s0, %s310
      %p312 = scmp.lt.s32.totalorder %s21, 2
      %s313 = scalar_select %p312, %s21, 2
      %s314 = smul.addr %s313, 8
      %s315 = scalar_lea.vmem %s1, %s314
      %p316 = scmp.lt.s32.totalorder %s21, 2
      %s317 = scalar_select %p316, %s21, 2
      %s318 = smul.addr %s317, 8
      %s319 = scalar_lea.vmem %s8, %s318
      %v321 = vld [vmem:[%s311] sm:$0xff]
      %v322 = vpack.c.bf16 %v321, %v321
      %v323 = vld [vmem:[%s315] sm:$0xff]
      %v324 = vpack.c.bf16 %v323, %v323
      %v326 = vunpack.c.l.b16 %v324
      %v327 = vpack.c.b16 %v326, %v326
      %328 = vrot.lane.b32.xlu0 %v327, 16
      %v329 = vpop.permute.xlu0 %328
      %vm330 = vcmask 130048
      %v333 = vsel %vm330, %v322, %v329
      %v334 = vld [vmem:[%s2] sm:$0xf]
      %v335 = vld [vmem:[%s2 + $0x4] sm:$0xf]
      %v336 = vld [vmem:[%s2 + $0x8] sm:$0xf]
      %v337 = vld [vmem:[%s3] sm:$0x1]
      %v339 = vperm.slane %v337, 0
      %v344 = vunpack.c.l.b16 %v334
      %v345 = vunpack.c.l.b16 %v335
      %v346 = vunpack.c.l.b16 %v336
      %v347 = vpack.c.b16 %v345, %v344
      %v348 = vpack.c.b16 %v346, %v346
      %vm350 = vcmask 195584
      %v351 = vsel %vm350, %v333, 0
      %vm353 = vcmask 1043456
      %v355 = vsel %vm353, %v348, 0
      %357 = vmatpush.bf16.msra.mxu0 0
      %358 = vmatpush.bf16.msra.mxu0 0
      %359 = vmatpush.bf16.msra.mxu0 0
      %360 = vmatpush.bf16.msra.mxu0 0
      %361 = vmatpush.bf16.msra.mxu0 0
      %362 = vmatpush.bf16.msra.mxu0 0
      %363 = vmatpush.bf16.msra.mxu0 %v355
      %364 = vmatpush.bf16.msra.mxu0 %v347
      %365 = vmatmul.bf16.gmra.mxu0 %v351
      %v366 = vpop.f32.mrf.mxu0
      %v367 = vadd.f32 %v339, %v366
      %v368 = vpop.f32.mrf.mxu0
      %369 = vdwg.mxu0
      %v370 = vmax.f32 %v367, 0.0
      %v371 = vpack.c.bf16 %v370, %v370
      %v372 = vld [vmem:[%s4] sm:$0xf]
      %v373 = vld [vmem:[%s4 + $0x4] sm:$0xf]
      %v374 = vld [vmem:[%s4 + $0x8] sm:$0xf]
      %v375 = vld [vmem:[%s4 + $0xc] sm:$0xf]
      %v376 = vld [vmem:[%s4 + $0x10] sm:$0xf]
      %v377 = vld [vmem:[%s4 + $0x14] sm:$0xf]
      %v378 = vld [vmem:[%s4 + $0x18] sm:$0xf]
      %v379 = vld [vmem:[%s4 + $0x1c] sm:$0xf]
      %v380 = vld [vmem:[%s4 + $0x20] sm:$0xf]
      %v381 = vld [vmem:[%s4 + $0x24] sm:$0xf]
      %v382 = vld [vmem:[%s4 + $0x28] sm:$0xf]
      %v383 = vld [vmem:[%s4 + $0x2c] sm:$0xf]
      %v384 = vld [vmem:[%s4 + $0x30] sm:$0xf]
      %v385 = vld [vmem:[%s4 + $0x34] sm:$0xf]
      %v386 = vld [vmem:[%s4 + $0x38] sm:$0xf]
      %v387 = vld [vmem:[%s4 + $0x3c] sm:$0xf]
      %v388 = vld [vmem:[%s5] sm:$0x1]
      %v390 = vperm.slane %v388, 0
      %v408 = vunpack.c.l.b16 %v372
      %v409 = vunpack.c.l.b16 %v373
      %v410 = vunpack.c.l.b16 %v374
      %v411 = vunpack.c.l.b16 %v375
      %v412 = vunpack.c.l.b16 %v376
      %v413 = vunpack.c.l.b16 %v377
      %v414 = vunpack.c.l.b16 %v378
      %v415 = vunpack.c.l.b16 %v379
      %v416 = vunpack.c.l.b16 %v380
      %v417 = vunpack.c.l.b16 %v381
      %v418 = vunpack.c.l.b16 %v382
      %v419 = vunpack.c.l.b16 %v383
      %v420 = vunpack.c.l.b16 %v384
      %v421 = vunpack.c.l.b16 %v385
      %v422 = vunpack.c.l.b16 %v386
      %v423 = vunpack.c.l.b16 %v387
      %v424 = vpack.c.b16 %v409, %v408
      %v425 = vpack.c.b16 %v411, %v410
      %v426 = vpack.c.b16 %v413, %v412
      %v427 = vpack.c.b16 %v415, %v414
      %v428 = vpack.c.b16 %v417, %v416
      %v429 = vpack.c.b16 %v419, %v418
      %v430 = vpack.c.b16 %v421, %v420
      %v431 = vpack.c.b16 %v423, %v422
      %440 = vmatpush.bf16.msra.mxu0 %v431
      %441 = vmatpush.bf16.msra.mxu0 %v430
      %442 = vmatpush.bf16.msra.mxu0 %v429
      %443 = vmatpush.bf16.msra.mxu0 %v428
      %444 = vmatpush.bf16.msra.mxu0 %v427
      %445 = vmatpush.bf16.msra.mxu0 %v426
      %446 = vmatpush.bf16.msra.mxu0 %v425
      %447 = vmatpush.bf16.msra.mxu0 %v424
      %448 = vmatmul.bf16.gmra.mxu0 %v371
      %v449 = vpop.f32.mrf.mxu0
      %v450 = vadd.f32 %v390, %v449
      %v451 = vpop.f32.mrf.mxu0
      %452 = vdwg.mxu0
      %v453 = vmax.f32 %v450, 0.0
      %v454 = vld [vmem:[%s6] sm:$0x1]
      %v456 = vperm.slane %v454, 0
      %v458 = vmul.f32 %v453, %v456
      %vm459 = vcmask 523264
      %v460 = vsel %vm459, %v458, 0.0
      %461 = vadd.xlane.f32.xlu0 %v460
      %v462 = vpop.xlane.xlu0 %461
      %v463 = vld [vmem:[#allocation2] sm:$0x1]
      %v465 = vperm.slane %v463, 0
      %v467 = vadd.f32 %v462, %v465
      %vm468 = vcmask 7168
      %469 = vst.msk [vmem:[%s319] sm:$0xff] %vm468, %v467
      %p470 = scmp.lt.s32.totalorder %s21, 2
      %s471 = scalar_select %p470, %s21, 2
      %s472 = smul.addr %s471, 8
      %s473 = scalar_lea.vmem %s8, %s472
      // Predicated region
      $region53: #{critic_forward.1} parent=51 // pred_check
        %p474 = pneg %p217
      $region54: #{critic_forward.1} parent=51 // pred_check_branch
        %476 = sbr.rel (%p474) target = $region56
      $region55: #{critic_forward.1} parent=51 // pred_region
        _
      $region56: #{critic_forward.1} parent=51 // pred_fallthru
        _
    $region52: #{critic_forward.1} parent=5 // pred_fallthru
      _
    %p477 = scmp.le.s32.totalorder 2, %s16
    // Predicated region
    $region57: #{critic_forward.1} parent=5 // pred_check
      %p478 = pneg %p477
    $region58: #{critic_forward.1} parent=5 // pred_check_branch
      %480 = sbr.rel (%p478) target = $region60
    $region59: #{critic_forward.1} parent=5 // pred_region
      %s481 = ssub.s32 %s16, 2
      // Predicated region
      $region61: #{critic_forward.1} parent=59 // pred_check
        %p482 = pneg %p223
      $region62: #{critic_forward.1} parent=59 // pred_check_branch
        %484 = sbr.rel (%p482) target = $region64
      $region63: #{critic_forward.1} parent=59 // pred_region
        %p485 = scmp.lt.s32.totalorder %s22, 2
        %s486 = scalar_select %p485, %s22, 2
        %s487 = smul.addr %s486, 8
        %s488 = scalar_lea.vmem %s8, %s487
      $region64: #{critic_forward.1} parent=59 // pred_fallthru
        _
    $region60: #{critic_forward.1} parent=5 // pred_fallthru
      _
  $region6: #{critic_forward.1} parent=0 // loop_footer
    %s20 = sadd.s32 1, %s16
  $region7: #{critic_forward.1} parent=0 // loop_footer_branch
    %15 = sbr.rel target = $region3
  $region8: #{critic_forward.1} parent=0 // loop_exit
    _

</llo_original>
